<compile_context>
chip_gen: v5e
topology: v5e:2x2
jax: 0.10.0
libtpu: 0.0.40
codegen_flags: <defaults>
</compile_context>

<pallas_src>
import functools
import math

import jax
import jax.numpy as jnp
from jax.experimental import pallas as pl
from jax.experimental.pallas import tpu as pltpu


_LOG_CLAMP_MIN = float(math.log(1e-9))  # lower clamp bound, in log space
# upper bound log(1 - 1e-9) rounds to 0.0 in fp32 and log_p <= 0 always -> no-op


def _afloss_kernel(pred_ref, target_ref, out_ref, *, n_total, tile_n, ragged):
    """One independent row tile per grid step -> per-tile partial sum."""
    logits = pred_ref[...].astype(jnp.float32)          # (tile_n, C)
    t = target_ref[...].astype(jnp.float32)             # (tile_n, C)

    if ragged:
        # Mask rows beyond the true N (the last partial block's padding is
        # unspecified garbage; zero it so it contributes exactly 0 and cannot
        # inject NaN/Inf into the reductions).
        row = (jax.lax.broadcasted_iota(jnp.int32, (tile_n, 1), 0)
               + pl.program_id(0) * tile_n)
        valid = row < n_total                            # (tile_n, 1)
        logits = jnp.where(valid, logits, 0.0)
        t = jnp.where(valid, t, 0.0)

    # numerically stable log-softmax along the class axis
    m = jnp.max(logits, axis=-1, keepdims=True)
    shifted = logits - m
    lse = jnp.log(jnp.sum(jnp.exp(shifted), axis=-1, keepdims=True))
    # torch.clamp(p, 1e-9, 1-1e-9) + log  ==  max(log_p, log(1e-9)) in fp32
    log_p = jnp.maximum(shifted - lse, _LOG_CLAMP_MIN)

    out_ref[0, 0] = -jnp.sum(t * log_p)                  # single fused reduce


def _round_up(x, m):
    return ((x + m - 1) // m) * m


def _choose_tile(n, c, itemsize):
    """Pick (tile_n, vmem_limit_bytes) from the chip's VMEM capacity."""
    c_pad = _round_up(c, 128)                            # 128-lane minor-dim tiles

    try:
        vmem_cap = int(pltpu.get_tpu_info().vmem_capacity_bytes)
    except Exception:
        vmem_cap = 64 * 1024 * 1024                      # v7x-safe fallback

    vmem_budget = int(vmem_cap * 0.60)                   # sizing budget
    vmem_limit = int(vmem_cap * 0.70)                    # compiler limit (headroom)

    # Resident bytes per tile row:
    #   2 inputs x 2 pipeline buffers at native dtype + ~4 f32 temporaries
    bytes_per_row = c_pad * (2 * 2 * itemsize + 4 * 4)
    cap_rows = max(vmem_budget // bytes_per_row, 8)

    # ~8 MiB per input block saturates HBM and amortizes the ~0.35 us/step cost
    target_rows = max((8 * 1024 * 1024) // (c_pad * itemsize), 8)

    tile_n = min(cap_rows, target_rows, _round_up(n, 8))
    tile_n = max((tile_n // 8) * 8, 8)

    # Guarantee >= 2 grid steps when N allows it so the "parallel" axis can
    # shard across both v7x TensorCores (negligible cost on v5e/v6e).
    if tile_n >= n and n > 8:
        tile_n = max(_round_up((n + 1) // 2, 8), 8)

    return tile_n, vmem_limit


def af_loss(pred, target):
    """Pallas implementation of AFLoss.forward for 2-D (N, C) inputs."""
    assert pred.shape == target.shape and pred.ndim == 2
    n, c = pred.shape

    itemsize = max(jnp.dtype(pred.dtype).itemsize,
                   jnp.dtype(target.dtype).itemsize)

    tile_n, vmem_limit = _choose_tile(n, c, itemsize)
    num_tiles = (n + tile_n - 1) // tile_n
    ragged = (n % tile_n) != 0

    kernel = functools.partial(_afloss_kernel,
                               n_total=n, tile_n=tile_n, ragged=ragged)

    partials = pl.pallas_call(
        kernel,
        out_shape=jax.ShapeDtypeStruct((num_tiles, 1), jnp.float32),
        grid=(num_tiles,),
        in_specs=[
            pl.BlockSpec((tile_n, c), lambda i: (i, 0)),
            pl.BlockSpec((tile_n, c), lambda i: (i, 0)),
        ],
        # per-tile scalar partial sums in SMEM; tiles are independent, so the
        # grid axis is safely "parallel" (megacore sharding on v7x).
        out_specs=pl.BlockSpec((1, 1), lambda i: (i, 0),
                               memory_space=pltpu.SMEM),
        compiler_params=pltpu.CompilerParams(
            dimension_semantics=("parallel",),
            vmem_limit_bytes=vmem_limit,
        ),
    )(pred, target)

    # mean over the original row count
    return jnp.sum(partials) / jnp.float32(n)


def af_loss_ref(pred, target):
    """Pure-JAX reference mirroring the PyTorch module."""
    p = jax.nn.softmax(pred, axis=1)
    p = jnp.clip(p, 1e-9, 1.0 - 1e-9)
    ce = -target * jnp.log(p)
    return jnp.mean(jnp.sum(ce, axis=1))


if __name__ == "__main__":
    key = jax.random.PRNGKey(0)
    k1, k2 = jax.random.split(key)

    N, C = 8, 32  # small shapes: batch=8, classes=32
    logits = jax.random.normal(k1, (N, C), dtype=jnp.float32)
    labels = jax.random.randint(k2, (N,), 0, C)
    target = jax.nn.one_hot(labels, C, dtype=jnp.float32)

    loss = af_loss(logits, target)
    loss = jax.block_until_ready(loss)

    ref = af_loss_ref(logits, target)
    assert jnp.allclose(loss, ref, rtol=1e-5, atol=1e-6), (loss, ref)

    # also exercise the ragged-tile path (N not a multiple of the tile)
    N2 = 13
    logits2 = jax.random.normal(k1, (N2, C), dtype=jnp.float32)
    labels2 = jax.random.randint(k2, (N2,), 0, C)
    target2 = jax.nn.one_hot(labels2, C, dtype=jnp.float32)
    loss2 = jax.block_until_ready(af_loss(logits2, target2))
    ref2 = af_loss_ref(logits2, target2)
    assert jnp.allclose(loss2, ref2, rtol=1e-5, atol=1e-6), (loss2, ref2)

    print("KERNEL_OK")
</pallas_src>

<mosaic_0001>
module attributes {stable_mosaic.version = 11 : i64} {
  func.func @_afloss_kernel(%arg0: i32, %arg1: memref<8x32xf32, #tpu.memory_space<vmem>>, %arg2: memref<8x32xf32, #tpu.memory_space<vmem>>, %arg3: memref<1x1xf32, #tpu.memory_space<smem>>) attributes {dimension_semantics = [#tpu.dimension_semantics<parallel>], iteration_bounds = array<i64: 1>, scalar_prefetch = 0 : i64, scratch_operands = 0 : i64, tpu.core_type = #tpu.core_type<tc>, window_params = [{transform_indices = @transform_0, window_bounds = array<i64: 8, 32>}, {transform_indices = @transform_1, window_bounds = array<i64: 8, 32>}, {transform_indices = @transform_2, window_bounds = array<i64: 1, 1>}]} {
    %c0 = arith.constant 0 : index
    %c0_0 = arith.constant 0 : index
    %0 = vector.load %arg1[%c0, %c0_0] : memref<8x32xf32, #tpu.memory_space<vmem>>, vector<8x32xf32>
    %c0_1 = arith.constant 0 : index
    %c0_2 = arith.constant 0 : index
    %1 = vector.load %arg2[%c0_1, %c0_2] : memref<8x32xf32, #tpu.memory_space<vmem>>, vector<8x32xf32>
    %cst = arith.constant dense<0xFF800000> : vector<8xf32>
    %2 = vector.multi_reduction <maximumf>, %0, %cst [1] : vector<8x32xf32> to vector<8xf32>
    %3 = vector.shape_cast %2 : vector<8xf32> to vector<8x1xf32>
    %4 = vector.broadcast %3 : vector<8x1xf32> to vector<8x32xf32>
    %5 = arith.subf %0, %4 : vector<8x32xf32>
    %6 = math.exp %5 : vector<8x32xf32>
    %cst_3 = arith.constant dense<0.000000e+00> : vector<8xf32>
    %7 = vector.multi_reduction <add>, %6, %cst_3 [1] : vector<8x32xf32> to vector<8xf32>
    %8 = vector.shape_cast %7 : vector<8xf32> to vector<8x1xf32>
    %9 = math.log %8 : vector<8x1xf32>
    %10 = vector.broadcast %9 : vector<8x1xf32> to vector<8x32xf32>
    %11 = arith.subf %5, %10 : vector<8x32xf32>
    %cst_4 = arith.constant -20.7232666 : f32
    %12 = vector.broadcast %cst_4 : f32 to vector<8x32xf32>
    %13 = arith.maximumf %11, %12 : vector<8x32xf32>
    %14 = arith.mulf %1, %13 : vector<8x32xf32>
    %15 = vector.shape_cast %14 : vector<8x32xf32> to vector<1x8x32xf32>
    %cst_5 = arith.constant dense<0.000000e+00> : vector<1xf32>
    %16 = vector.multi_reduction <add>, %15, %cst_5 [1, 2] : vector<1x8x32xf32> to vector<1xf32>
    %17 = vector.shape_cast %16 : vector<1xf32> to vector<1x1x1xf32>
    %18 = vector.extract %17[0, 0, 0] : f32 from vector<1x1x1xf32>
    %cst_6 = arith.constant 0.000000e+00 : f32
    %19 = arith.subf %cst_6, %18 : f32
    %c0_7 = arith.constant 0 : index
    %c0_8 = arith.constant 0 : index
    %20 = memref.load %arg3[%c0_7, %c0_8] : memref<1x1xf32, #tpu.memory_space<smem>>
    memref.store %19, %arg3[%c0_7, %c0_8] : memref<1x1xf32, #tpu.memory_space<smem>>
    return
  }
  func.func @transform_0(%arg0: i32) -> (i32, i32) {
    %c0_i32 = arith.constant 0 : i32
    %c0_i32_0 = arith.constant 0 : i32
    return %arg0, %c0_i32 : i32, i32
  }
  func.func @transform_1(%arg0: i32) -> (i32, i32) {
    %c0_i32 = arith.constant 0 : i32
    %c0_i32_0 = arith.constant 0 : i32
    return %arg0, %c0_i32 : i32, i32
  }
  func.func @transform_2(%arg0: i32) -> (i32, i32) {
    %c0_i32 = arith.constant 0 : i32
    %c0_i32_0 = arith.constant 0 : i32
    return %arg0, %c0_i32 : i32, i32
  }
}

</mosaic_0001>

<llo_original>
// kernel: tpu_custom_call.1
$region0: #{tpu_custom_call.1}
  #allocation0 [shape = 'u32[]', space=smem, size = 0x4, offset = 0x4, fixed_abs, tag = 'smem constant byte address 0x4 - core index']
  #allocation1 [shape = 'u32[72,128]{1,0:T(1,128)}', space=vmem, size = 0x9000, scoped, tag = 'internal scratch']
  %s0 = inlined_call_operand.hbm [shape: f32[8,32], index: 0, kind: input, shape index: {}]
  %s1 = inlined_call_operand.hbm [shape: f32[8,32], index: 1, kind: input, shape index: {}]
  %s2 = inlined_call_operand.hbm [shape: f32[1,1], index: 2, kind: output, shape index: {}]
  %s3 = sld [smem:[#allocation0]]
  $region26: #{tpu_custom_call.1} parent=0
    _
  %s5 = ssub.s32 1, %s3
  %s6 = scalar_select 0, %s5, %s3
  $region1: #{tpu_custom_call.1} parent=0
    #allocation2 [shape = 'u8[4096]{0}', space=vmem, size = 0x1000, scoped, tag = 'input window, operand 0, single buffered']
    #allocation3 [shape = 's32[1]{0}', space=sflag, size = 0x4, scoped, tag = 'scoped memory for tpu_custom_call.1']
    #allocation4 [shape = 's32[1]{0}', space=sflag, size = 0x4, scoped, tag = 'scoped memory for tpu_custom_call.1']
    #allocation5 [shape = 'u8[4096]{0}', space=vmem, size = 0x1000, scoped, tag = 'input window, operand 1, single buffered']
    #allocation6 [shape = 's32[1]{0}', space=sflag, size = 0x4, scoped, tag = 'scoped memory for tpu_custom_call.1']
    #allocation7 [shape = 'u8[512]{0}', space=smem, size = 0x200, scoped, tag = 'output window, operand 0, single buffered']
    %7 = vsyncpa [#allocation3], 0
    %8 = vsyncpa [#allocation6], 0
    %9 = vsyncpa [#allocation4], 0
    // Predicated region
    $region2: #{tpu_custom_call.1} parent=1 // pred_check
      _
    $region3: #{tpu_custom_call.1} parent=1 // pred_check_branch
      %11 = sbr.rel (0) target = $region5
    $region4: #{tpu_custom_call.1} parent=1 // pred_region
      %13 = vsyncadd [#allocation3], 0
      %s15 = sshll.u32 %s0, 4
      %s16 = int_to_ptr.hbm [resolvable:$true] %s15
      %s17 = sshll.u32 [#allocation2], 4
      %s18 = int_to_ptr.vmem [resolvable:$true] %s17
      %20 = dma.hbm_to_vmem [thread:$0]  %s16, 128, %s18, [#allocation3]
    $region5: #{tpu_custom_call.1} parent=1 // pred_fallthru
      _
    // Predicated region
    $region6: #{tpu_custom_call.1} parent=1 // pred_check
      _
    $region7: #{tpu_custom_call.1} parent=1 // pred_check_branch
      %22 = sbr.rel (0) target = $region9
    $region8: #{tpu_custom_call.1} parent=1 // pred_region
      %24 = vsyncadd [#allocation6], 0
      %s26 = sshll.u32 %s1, 4
      %s27 = int_to_ptr.hbm [resolvable:$true] %s26
      %s28 = sshll.u32 [#allocation5], 4
      %s29 = int_to_ptr.vmem [resolvable:$true] %s28
      %31 = dma.hbm_to_vmem [thread:$0]  %s27, 128, %s29, [#allocation6]
    $region9: #{tpu_custom_call.1} parent=1 // pred_fallthru
      _
    // Predicated region
    $region10: #{tpu_custom_call.1} parent=1 // pred_check
      _
    $region11: #{tpu_custom_call.1} parent=1 // pred_check_branch
      %33 = sbr.rel (0) target = $region13
    $region12: #{tpu_custom_call.1} parent=1 // pred_region
      %35 = dma.done [#allocation3], 128
    $region13: #{tpu_custom_call.1} parent=1 // pred_fallthru
      _
    // Predicated region
    $region14: #{tpu_custom_call.1} parent=1 // pred_check
      _
    $region15: #{tpu_custom_call.1} parent=1 // pred_check_branch
      %37 = sbr.rel (0) target = $region17
    $region16: #{tpu_custom_call.1} parent=1 // pred_region
      %39 = dma.done [#allocation6], 128
    $region17: #{tpu_custom_call.1} parent=1 // pred_fallthru
      _
    %v40 = vld [vmem:[#allocation2] sm:$0xff]
    %v41 = vld [vmem:[#allocation5] sm:$0xff]
    %vm42 = vcmask 261120
    %v43 = vsel %vm42, %v40, -inf
    %44 = vmax.xlane.f32.xlu0 %v43
    %v45 = vpop.xlane.xlu0 %44
    %v46 = vsub.f32 %v40, %v45
    %v47 = vmul.f32 %v46, 1.442695
    %v48 = vpow.pop %v47
    %v49 = vsel %vm42, %v48, 0.0
    %50 = vadd.xlane.f32.xlu0 %v49
    %v51 = vpop.xlane.xlu0 %50
    %v52 = vlog2.pop %v51
    %v53 = vmul.f32 %v52, 0.6931472
    %v54 = vsub.f32 %v46, %v53
    %v55 = vmax.f32 %v54, -20.723267
    %v56 = vmul.f32 %v41, %v55
    %v57 = vsel %vm42, %v56, 0.0
    %58 = vadd.xlane.f32.xlu0 %v57
    %v59 = vpop.xlane.xlu0 %58
    %v60 = vrot.slane %v59, 4
    %v61 = vadd.f32 %v59, %v60
    %v62 = vrot.slane %v61, 2
    %v63 = vadd.f32 %v61, %v62
    %v64 = vrot.slane %v63, 1
    %v65 = vadd.f32 %v63, %v64
    %s66 = vtos %v65
    %s67 = ssub.f32 0.0, %s66
    %s68 = scalar_lea.smem [#allocation7], 0
    %69 = sst [smem:[%s68]] %s67
    // Predicated region
    $region18: #{tpu_custom_call.1} parent=1 // pred_check
      _
    $region19: #{tpu_custom_call.1} parent=1 // pred_check_branch
      %71 = sbr.rel (0) target = $region21
    $region20: #{tpu_custom_call.1} parent=1 // pred_region
      %73 = vsyncadd [#allocation4], 0
      %s75 = sshll.u32 %s2, 4
      %s76 = int_to_ptr.hbm [resolvable:$true] %s75
      %78 = dma.smem_to_hbm [#allocation7], 16, %s76, [#allocation4]
    $region21: #{tpu_custom_call.1} parent=1 // pred_fallthru
      _
    // Predicated region
    $region22: #{tpu_custom_call.1} parent=1 // pred_check
      _
    $region23: #{tpu_custom_call.1} parent=1 // pred_check_branch
      %80 = sbr.rel (0) target = $region25
    $region24: #{tpu_custom_call.1} parent=1 // pred_region
      %82 = dma.done [#allocation4], 16
    $region25: #{tpu_custom_call.1} parent=1 // pred_fallthru
      _
    %83 = sfence
    %84 = vsyncpa [#allocation3], 1
    %85 = vsyncpa [#allocation6], 1
    %86 = vsyncpa [#allocation4], 1

</llo_original>
